<compile_context>
chip_gen: v6e
topology: v6e:2x2x1
jax: 0.10.0
libtpu: 0.0.40
codegen_flags: <defaults>
</compile_context>

<pallas_src>
import functools

import jax
import jax.numpy as jnp
from jax import lax
from jax.experimental import pallas as pl
from jax.experimental.pallas import tpu as pltpu

LN_EPS = 1e-5  # torch.nn.LayerNorm default


def _patch_merging_kernel(x_ref, wa_ref, wb_ref, csum_ref, bias_ref, o_ref, *, flatten):
    """Fused 2x2 patch merge + LayerNorm(4C) + Linear(4C -> 2C, no bias).

    x_ref:    (tile_rp, 2, tpr, 2C) raw activations; dim1 = image-row parity,
              last dim = two adjacent columns' channels.
    wa_ref:   (2C, 2C_out) gamma-folded weight rows for even image rows [x0|x2]
    wb_ref:   (2C, 2C_out) gamma-folded weight rows for odd  image rows [x1|x3]
    csum_ref: (1, 2C_out)  gamma @ Wt (column sums of folded weight), f32
    bias_ref: (1, 2C_out)  beta @ Wt, f32
    o_ref:    (tile_rp, tpr, 2C_out)
    """
    tile_rp, _, tpr, two_c = x_ref.shape
    n_out = o_ref.shape[-1]
    inv_n = 1.0 / (2.0 * two_c)  # 1 / (4C)

    wa = wa_ref[...]
    wb = wb_ref[...]
    csum = csum_ref[...]
    bias = bias_ref[...]

    def merged_ln_linear(a, b):
        # MXU: raw activations in their native dtype, f32 accumulation.
        acc = jnp.dot(a, wa, preferred_element_type=jnp.float32)
        acc = acc + jnp.dot(b, wb, preferred_element_type=jnp.float32)
        # LayerNorm statistics over the full 4C group, f32, two-pass variance.
        s1 = (jnp.sum(a, axis=-1, keepdims=True, dtype=jnp.float32)
              + jnp.sum(b, axis=-1, keepdims=True, dtype=jnp.float32))
        mean = s1 * inv_n
        da = a.astype(jnp.float32) - mean
        ssq = jnp.sum(da * da, axis=-1, keepdims=True)
        db = b.astype(jnp.float32) - mean
        ssq = ssq + jnp.sum(db * db, axis=-1, keepdims=True)
        inv_std = lax.rsqrt(ssq * inv_n + LN_EPS)
        # LN folded around the matmul.
        out = (acc - mean * csum) * inv_std + bias
        return out.astype(o_ref.dtype)

    if flatten:
        # Pure relabel (tpr % 8 == 0 or tile_rp == 1): no VMEM relayout.
        rows = tile_rp * tpr
        a = x_ref[:, 0, :, :].reshape(rows, two_c)   # even rows: [x0 | x2]
        b = x_ref[:, 1, :, :].reshape(rows, two_c)   # odd  rows: [x1 | x3]
        o_ref[...] = merged_ln_linear(a, b).reshape(tile_rp, tpr, n_out)
    else:
        # tpr not sublane-aligned: flattening would relayout the whole tile,
        # so keep each row pair 2-D.  tile_rp is capped by the wrapper.
        for r in range(tile_rp):
            o_ref[r, :, :] = merged_ln_linear(x_ref[r, 0, :, :], x_ref[r, 1, :, :])


def _vmem_capacity_bytes():
    """Per-core VMEM capacity; conservative (v7x-sized) default if unknown."""
    try:
        info = pltpu.get_tpu_info()
        cap = int(getattr(info, "vmem_capacity_bytes", 0) or 0)
        if cap > 0:
            return cap
    except Exception:
        pass
    return 64 * 2 ** 20


def _invariant_spec(block_shape):
    """Grid-invariant operand: fetched once; single-buffered when supported."""
    def idx(*_):
        return (0,) * len(block_shape)
    try:
        return pl.BlockSpec(block_shape, idx, pipeline_mode=pl.Buffered(1))
    except (AttributeError, TypeError):
        return pl.BlockSpec(block_shape, idx)


def _pick_tile_rp(rp_total, tok_per_rp, target_rows, max_rp):
    """Largest divisor of rp_total fitting the row budget; prefers a
    sublane-aligned flattened tile and an even grid length (v7x 2-TC)."""
    divs = [d for d in range(1, rp_total + 1) if rp_total % d == 0]
    fitting = [d for d in divs if d <= max_rp and d * tok_per_rp <= target_rows] or [1]

    def score(d):
        rows = d * tok_per_rp
        steps = rp_total // d
        return (
            (rows % 8 == 0) or d == rp_total,   # layout-friendly flatten
            steps % 2 == 0,                     # even grid: both v7x TCs busy
            steps >= 2,                         # leave work to shard across cores
            rows,                               # then: as large as possible
        )

    return max(fitting, key=score)


def patch_merging_forward(x, ln_gamma, ln_beta, red_weight):
    """Swin PatchMerging forward.

    x:          (B, H*W, C)
    ln_gamma:   (4C,)     LayerNorm weight
    ln_beta:    (4C,)     LayerNorm bias
    red_weight: (2C, 4C)  nn.Linear(4C, 2C, bias=False).weight (torch layout)
    returns:    (B, H*W/4, 2C)
    """
    B, L, C = x.shape
    H = W = int(round(L ** 0.5))   # matches the torch module's forward
    assert L == H * W, "input feature has wrong size"
    assert H % 2 == 0 and W % 2 == 0, f"x size ({H}*{W}) are not even."

    rp_total = B * (H // 2)        # number of image-row pairs
    tpr = W // 2                   # merged tokens per row pair
    n_out = 2 * C
    f32 = jnp.float32

    # ---- one-time tiny weight prep: fold LN affine + 2x2 concat reorder ----
    w_t = red_weight.T.astype(f32)                     # (4C, 2C)
    w_g = w_t * ln_gamma.astype(f32)[:, None]          # diag(gamma) @ Wt
    bias = (ln_beta.astype(f32) @ w_t).reshape(1, n_out)
    csum = jnp.sum(w_g, axis=0).reshape(1, n_out)      # gamma @ Wt
    w0, w1, w2, w3 = jnp.split(w_g, 4, axis=0)         # concat order x0,x1,x2,x3
    w_a = jnp.concatenate([w0, w2], axis=0).astype(x.dtype)  # even rows: [x0|x2]
    w_b = jnp.concatenate([w1, w3], axis=0).astype(x.dtype)  # odd  rows: [x1|x3]

    # ---- free reshape: (B, H*W, C) -> (row pair, parity, token, 2C) --------
    x4 = x.reshape(rp_total, 2, tpr, 2 * C)

    # ---- generation-aware tiling -------------------------------------------
    in_isz = jnp.dtype(x.dtype).itemsize
    vmem_cap = _vmem_capacity_bytes()
    # Double-buffered (in + out) activation-block budget per generation.
    block_budget = (28 if vmem_cap >= 96 * 2 ** 20 else 20) * 2 ** 20
    wgt_bytes = 2 * (2 * C) * n_out * in_isz + 2 * n_out * 4
    act_budget = max(2 * tpr * 2 * (4 * C + n_out) * in_isz,
                     block_budget - 2 * wgt_bytes)
    bytes_per_row = 2 * (4 * C * in_isz + n_out * in_isz)
    target_rows = max(tpr, min(8192, act_budget // max(1, bytes_per_row)))
    aligned = (tpr % 8 == 0)
    max_rp = rp_total if aligned else 32   # bound the unrolled fallback loop
    tile_rp = _pick_tile_rp(rp_total, tpr, target_rows, max_rp)
    flatten = aligned or tile_rp == 1
    grid = (rp_total // tile_rp,)

    # ---- explicit VMEM budget: real footprint + headroom, capped -----------
    x_blk = tile_rp * 2 * tpr * 2 * C * in_isz
    o_blk = tile_rp * tpr * n_out * in_isz
    footprint = 2 * (x_blk + o_blk) + wgt_bytes        # activations dbl-buffered
    vmem_limit = int(min(vmem_cap - (8 << 20),
                         max(16 << 20, footprint + footprint // 4 + (2 << 20))))

    out3 = pl.pallas_call(
        functools.partial(_patch_merging_kernel, flatten=flatten),
        out_shape=jax.ShapeDtypeStruct((rp_total, tpr, n_out), x.dtype),
        grid_spec=pltpu.PrefetchScalarGridSpec(
            num_scalar_prefetch=0,
            grid=grid,
            in_specs=[
                pl.BlockSpec((tile_rp, 2, tpr, 2 * C), lambda i: (i, 0, 0, 0)),
                _invariant_spec((2 * C, n_out)),
                _invariant_spec((2 * C, n_out)),
                _invariant_spec((1, n_out)),
                _invariant_spec((1, n_out)),
            ],
            out_specs=pl.BlockSpec((tile_rp, tpr, n_out), lambda i: (i, 0, 0)),
        ),
        compiler_params=pltpu.CompilerParams(
            dimension_semantics=("parallel",),
            vmem_limit_bytes=vmem_limit,
        ),
    )(x4, w_a, w_b, csum, bias)

    # Free HBM reshape; no post-kernel slice (output emitted unpadded).
    return out3.reshape(B, (H // 2) * (W // 2), n_out)


def _reference_forward(x, ln_gamma, ln_beta, red_weight):
    """Pure-JAX (f32) reference mirroring the PyTorch module."""
    B, L, C = x.shape
    H = W = int(round(L ** 0.5))
    xg = x.astype(jnp.float32).reshape(B, H, W, C)
    x0 = xg[:, 0::2, 0::2, :]
    x1 = xg[:, 1::2, 0::2, :]
    x2 = xg[:, 0::2, 1::2, :]
    x3 = xg[:, 1::2, 1::2, :]
    xm = jnp.concatenate([x0, x1, x2, x3], axis=-1).reshape(B, -1, 4 * C)
    mean = jnp.mean(xm, axis=-1, keepdims=True)
    var = jnp.mean((xm - mean) ** 2, axis=-1, keepdims=True)
    xn = (xm - mean) / jnp.sqrt(var + LN_EPS)
    xn = xn * ln_gamma.astype(jnp.float32) + ln_beta.astype(jnp.float32)
    return xn @ red_weight.T.astype(jnp.float32)


if __name__ == "__main__":
    key = jax.random.PRNGKey(0)
    k_x, k_g, k_b, k_w = jax.random.split(key, 4)

    # Small shapes consistent with the module: B=2, H=W=16 (L=256), dim C=16.
    B, H, W, C = 2, 16, 16, 16
    x = jax.random.normal(k_x, (B, H * W, C), dtype=jnp.float32)
    ln_gamma = 1.0 + 0.1 * jax.random.normal(k_g, (4 * C,), dtype=jnp.float32)
    ln_beta = 0.1 * jax.random.normal(k_b, (4 * C,), dtype=jnp.float32)
    red_weight = 0.1 * jax.random.normal(k_w, (2 * C, 4 * C), dtype=jnp.float32)

    fwd = jax.jit(patch_merging_forward)

    # f32 correctness vs. reference.
    out = jax.block_until_ready(fwd(x, ln_gamma, ln_beta, red_weight))
    ref = _reference_forward(x, ln_gamma, ln_beta, red_weight)
    assert out.shape == (B, (H // 2) * (W // 2), 2 * C), out.shape
    err = float(jnp.max(jnp.abs(out - ref)))
    assert err < 1e-4, f"f32 mismatch vs reference: {err}"

    # bf16 fast path (half HBM bytes, full-rate bf16 MXU) — looser tolerance.
    xb = x.astype(jnp.bfloat16)
    out_bf = jax.block_until_ready(fwd(xb, ln_gamma, ln_beta, red_weight))
    ref_bf = _reference_forward(xb.astype(jnp.float32), ln_gamma, ln_beta, red_weight)
    err_bf = float(jnp.max(jnp.abs(out_bf.astype(jnp.float32) - ref_bf)))
    assert err_bf < 1e-1, f"bf16 mismatch vs reference: {err_bf}"

    print("KERNEL_OK")
</pallas_src>

<mosaic_0001>
module attributes {stable_mosaic.version = 11 : i64} {
  func.func @_patch_merging_kernel(%arg0: i32, %arg1: memref<8x2x8x32xf32, #tpu.memory_space<vmem>>, %arg2: memref<32x32xf32, #tpu.memory_space<vmem>>, %arg3: memref<32x32xf32, #tpu.memory_space<vmem>>, %arg4: memref<1x32xf32, #tpu.memory_space<vmem>>, %arg5: memref<1x32xf32, #tpu.memory_space<vmem>>, %arg6: memref<8x8x32xf32, #tpu.memory_space<vmem>>) attributes {dimension_semantics = [#tpu.dimension_semantics<parallel>], iteration_bounds = array<i64: 2>, scalar_prefetch = 0 : i64, scratch_operands = 0 : i64, tpu.core_type = #tpu.core_type<tc>, window_params = [{transform_indices = @transform_0, window_bounds = array<i64: 8, 2, 8, 32>}, {pipeline_mode = #tpu.pipeline_mode<synchronous>, transform_indices = @transform_1, window_bounds = array<i64: 32, 32>}, {pipeline_mode = #tpu.pipeline_mode<synchronous>, transform_indices = @transform_2, window_bounds = array<i64: 32, 32>}, {pipeline_mode = #tpu.pipeline_mode<synchronous>, transform_indices = @transform_3, window_bounds = array<i64: 1, 32>}, {pipeline_mode = #tpu.pipeline_mode<synchronous>, transform_indices = @transform_4, window_bounds = array<i64: 1, 32>}, {transform_indices = @transform_5, window_bounds = array<i64: 8, 8, 32>}]} {
    %c0 = arith.constant 0 : index
    %c0_0 = arith.constant 0 : index
    %0 = vector.load %arg2[%c0, %c0_0] : memref<32x32xf32, #tpu.memory_space<vmem>>, vector<32x32xf32>
    %c0_1 = arith.constant 0 : index
    %c0_2 = arith.constant 0 : index
    %1 = vector.load %arg3[%c0_1, %c0_2] : memref<32x32xf32, #tpu.memory_space<vmem>>, vector<32x32xf32>
    %c0_3 = arith.constant 0 : index
    %c0_4 = arith.constant 0 : index
    %2 = vector.load %arg4[%c0_3, %c0_4] : memref<1x32xf32, #tpu.memory_space<vmem>>, vector<1x32xf32>
    %c0_5 = arith.constant 0 : index
    %c0_6 = arith.constant 0 : index
    %3 = vector.load %arg5[%c0_5, %c0_6] : memref<1x32xf32, #tpu.memory_space<vmem>>, vector<1x32xf32>
    %c0_7 = arith.constant 0 : index
    %c0_8 = arith.constant 0 : index
    %c0_9 = arith.constant 0 : index
    %c0_10 = arith.constant 0 : index
    %4 = vector.load %arg1[%c0_7, %c0_8, %c0_9, %c0_10] : memref<8x2x8x32xf32, #tpu.memory_space<vmem>>, vector<8x1x8x32xf32>
    %5 = vector.shape_cast %4 : vector<8x1x8x32xf32> to vector<8x8x32xf32>
    %6 = vector.shape_cast %5 : vector<8x8x32xf32> to vector<64x32xf32>
    %c0_11 = arith.constant 0 : index
    %c1 = arith.constant 1 : index
    %c0_12 = arith.constant 0 : index
    %c0_13 = arith.constant 0 : index
    %7 = vector.load %arg1[%c0_11, %c1, %c0_12, %c0_13] : memref<8x2x8x32xf32, #tpu.memory_space<vmem>>, vector<8x1x8x32xf32>
    %8 = vector.shape_cast %7 : vector<8x1x8x32xf32> to vector<8x8x32xf32>
    %9 = vector.shape_cast %8 : vector<8x8x32xf32> to vector<64x32xf32>
    %cst = arith.constant dense<0.000000e+00> : vector<64x32xf32>
    %10 = tpu.matmul %6, %0, %cst {dimension_numbers = #tpu.dot_dimension_numbers<[1], [0], [0], [1], [0, 0, 1, 1], [], []>} : vector<64x32xf32>, vector<32x32xf32>, vector<64x32xf32> -> vector<64x32xf32>
    %cst_14 = arith.constant dense<0.000000e+00> : vector<64x32xf32>
    %11 = tpu.matmul %9, %1, %cst_14 {dimension_numbers = #tpu.dot_dimension_numbers<[1], [0], [0], [1], [0, 0, 1, 1], [], []>} : vector<64x32xf32>, vector<32x32xf32>, vector<64x32xf32> -> vector<64x32xf32>
    %12 = arith.addf %10, %11 : vector<64x32xf32>
    %cst_15 = arith.constant dense<0.000000e+00> : vector<64xf32>
    %13 = vector.multi_reduction <add>, %6, %cst_15 [1] : vector<64x32xf32> to vector<64xf32>
    %14 = vector.shape_cast %13 : vector<64xf32> to vector<64x1xf32>
    %cst_16 = arith.constant dense<0.000000e+00> : vector<64xf32>
    %15 = vector.multi_reduction <add>, %9, %cst_16 [1] : vector<64x32xf32> to vector<64xf32>
    %16 = vector.shape_cast %15 : vector<64xf32> to vector<64x1xf32>
    %17 = arith.addf %14, %16 : vector<64x1xf32>
    %cst_17 = arith.constant 1.562500e-02 : f32
    %18 = vector.broadcast %cst_17 : f32 to vector<64x1xf32>
    %19 = arith.mulf %17, %18 : vector<64x1xf32>
    %20 = vector.broadcast %19 : vector<64x1xf32> to vector<64x32xf32>
    %21 = arith.subf %6, %20 : vector<64x32xf32>
    %22 = arith.mulf %21, %21 : vector<64x32xf32>
    %cst_18 = arith.constant dense<0.000000e+00> : vector<64xf32>
    %23 = vector.multi_reduction <add>, %22, %cst_18 [1] : vector<64x32xf32> to vector<64xf32>
    %24 = vector.shape_cast %23 : vector<64xf32> to vector<64x1xf32>
    %25 = vector.broadcast %19 : vector<64x1xf32> to vector<64x32xf32>
    %26 = arith.subf %9, %25 : vector<64x32xf32>
    %27 = arith.mulf %26, %26 : vector<64x32xf32>
    %cst_19 = arith.constant dense<0.000000e+00> : vector<64xf32>
    %28 = vector.multi_reduction <add>, %27, %cst_19 [1] : vector<64x32xf32> to vector<64xf32>
    %29 = vector.shape_cast %28 : vector<64xf32> to vector<64x1xf32>
    %30 = arith.addf %24, %29 : vector<64x1xf32>
    %cst_20 = arith.constant 1.562500e-02 : f32
    %31 = vector.broadcast %cst_20 : f32 to vector<64x1xf32>
    %32 = arith.mulf %30, %31 : vector<64x1xf32>
    %cst_21 = arith.constant 9.99999974E-6 : f32
    %33 = vector.broadcast %cst_21 : f32 to vector<64x1xf32>
    %34 = arith.addf %32, %33 : vector<64x1xf32>
    %35 = math.rsqrt %34 : vector<64x1xf32>
    %36 = vector.broadcast %19 : vector<64x1xf32> to vector<64x32xf32>
    %37 = vector.broadcast %2 : vector<1x32xf32> to vector<64x32xf32>
    %38 = arith.mulf %36, %37 : vector<64x32xf32>
    %39 = arith.subf %12, %38 : vector<64x32xf32>
    %40 = vector.broadcast %35 : vector<64x1xf32> to vector<64x32xf32>
    %41 = arith.mulf %39, %40 : vector<64x32xf32>
    %42 = vector.broadcast %3 : vector<1x32xf32> to vector<64x32xf32>
    %43 = arith.addf %41, %42 : vector<64x32xf32>
    %44 = vector.shape_cast %43 : vector<64x32xf32> to vector<8x8x32xf32>
    %c0_22 = arith.constant 0 : index
    %c0_23 = arith.constant 0 : index
    %c0_24 = arith.constant 0 : index
    %45 = vector.load %arg6[%c0_22, %c0_23, %c0_24] : memref<8x8x32xf32, #tpu.memory_space<vmem>>, vector<8x8x32xf32>
    tpu.vector_store %arg6[%c0_22, %c0_23, %c0_24], %44 {strides = array<i32>} : memref<8x8x32xf32, #tpu.memory_space<vmem>>, vector<8x8x32xf32>,
    return
  }
  func.func @transform_0(%arg0: i32) -> (i32, i32, i32, i32) {
    %c0_i32 = arith.constant 0 : i32
    %c0_i32_0 = arith.constant 0 : i32
    %c0_i32_1 = arith.constant 0 : i32
    %c0_i32_2 = arith.constant 0 : i32
    return %arg0, %c0_i32, %c0_i32_0, %c0_i32_1 : i32, i32, i32, i32
  }
  func.func @transform_1(%arg0: i32) -> (i32, i32) {
    %c0_i32 = arith.constant 0 : i32
    %c0_i32_0 = arith.constant 0 : i32
    %c0_i32_1 = arith.constant 0 : i32
    return %c0_i32, %c0_i32_0 : i32, i32
  }
  func.func @transform_2(%arg0: i32) -> (i32, i32) {
    %c0_i32 = arith.constant 0 : i32
    %c0_i32_0 = arith.constant 0 : i32
    %c0_i32_1 = arith.constant 0 : i32
    return %c0_i32, %c0_i32_0 : i32, i32
  }
  func.func @transform_3(%arg0: i32) -> (i32, i32) {
    %c0_i32 = arith.constant 0 : i32
    %c0_i32_0 = arith.constant 0 : i32
    %c0_i32_1 = arith.constant 0 : i32
    return %c0_i32, %c0_i32_0 : i32, i32
  }
  func.func @transform_4(%arg0: i32) -> (i32, i32) {
    %c0_i32 = arith.constant 0 : i32
    %c0_i32_0 = arith.constant 0 : i32
    %c0_i32_1 = arith.constant 0 : i32
    return %c0_i32, %c0_i32_0 : i32, i32
  }
  func.func @transform_5(%arg0: i32) -> (i32, i32, i32) {
    %c0_i32 = arith.constant 0 : i32
    %c0_i32_0 = arith.constant 0 : i32
    %c0_i32_1 = arith.constant 0 : i32
    return %arg0, %c0_i32, %c0_i32_0 : i32, i32, i32
  }
}

</mosaic_0001>

<llo_original>
// kernel: patch_merging_forward.1
$region0: #{patch_merging_forward.1}
  #allocation0 [shape = 'u32[]', space=smem, size = 0x4, offset = 0x4, fixed_abs, tag = 'smem constant byte address 0x4 - core index']
  #allocation1 [shape = 'u32[144,128]{1,0:T(1,128)}', space=vmem, size = 0x12000, scoped, tag = 'internal scratch']
  %s0 = inlined_call_operand.vmem [shape: f32[16,2,8,32], index: 0, kind: input, shape index: {}]
  %s1 = inlined_call_operand.vmem [shape: f32[32,32], index: 1, kind: input, shape index: {}]
  %s2 = inlined_call_operand.vmem [shape: f32[32,32], index: 2, kind: input, shape index: {}]
  %s3 = inlined_call_operand.vmem [shape: f32[1,32], index: 3, kind: input, shape index: {}]
  %s4 = inlined_call_operand.vmem [shape: f32[1,32], index: 4, kind: input, shape index: {}]
  %s5 = inlined_call_operand.vmem [shape: f32[16,8,32], index: 5, kind: output, shape index: {}]
  %s6 = sld [smem:[#allocation0]]
  $region53: #{patch_merging_forward.1} parent=0
    _
  %s8 = ssub.s32 1, %s6
  %s9 = scalar_select 0, %s8, %s6
  loop: start=0, step=1, limit=4
  $region2: #{patch_merging_forward.1} parent=0 // loop_pre_header
    _
  $region3: #{patch_merging_forward.1} parent=0 // loop_header
    %s11 = sphi 0, %s15
    %p12 = scmp.ge.s32.totalorder %s11, 4
    %s21 = sphi 0, %s23
    %s24 = sphi 0, %s21
    %s25 = sphi 0, %s24
    %s41 = sphi 0, %s25
    %s45 = sphi 0, %s45
    %s47 = sphi 0, %s45
    %s48 = sphi 0, %s47
    %s62 = sphi 0, %s48
    %s66 = sphi 0, %s66
    %s68 = sphi 0, %s66
    %s69 = sphi 0, %s68
    %s83 = sphi 0, %s69
    %s87 = sphi 0, %s87
    %s89 = sphi 0, %s87
    %s90 = sphi 0, %s89
    %s104 = sphi 0, %s90
    %s108 = sphi 0, %s108
    %s110 = sphi 0, %s108
    %s111 = sphi 0, %s110
    %s125 = sphi 0, %s111
    %s131 = sphi 0, %s133
    %s134 = sphi 0, %s131
    %s135 = sphi 0, %s134
    %s151 = sphi 0, %s135
  $region4: #{patch_merging_forward.1} parent=0 // loop_header_branch
    %14 = sbr.rel (%p12) target = $region8
  $region5: #{patch_merging_forward.1} parent=0 // loop_body
    %s16 = ssub.s32 %s11, 1
    %s17 = ssub.s32 %s11, 2
    %s18 = sadd.s32 %s11, 1
    %s19 = ssub.s32 %s11, %s18
    %p20 = scmp.eq.s32.totalorder %s19, 0
    %s22 = sadd.s32 %s21, 1
    %s23 = scalar_select %p20, %s21, %s22
    %p26 = pneg %p20
    %p27 = scmp.eq.s32.totalorder %s11, 1
    %p28 = por %p26, %p27
    %p29 = scmp.ne.s32.totalorder %s21, %s24
    %p30 = scmp.eq.s32.totalorder %s11, 0
    %p31 = por %p29, %p30
    %p32 = scmp.ne.s32.totalorder %s21, %s24
    %p33 = scmp.eq.s32.totalorder %s16, 1
    %p34 = por %p32, %p33
    %p35 = scmp.ne.s32.totalorder %s24, %s25
    %p36 = scmp.eq.s32.totalorder %s16, 0
    %p37 = por %p35, %p36
    %p38 = scmp.ne.s32.totalorder %s24, %s25
    %p39 = scmp.eq.s32.totalorder %s17, 1
    %p40 = por %p38, %p39
    %p42 = scmp.ne.s32.totalorder %s25, %s41
    %p43 = scmp.eq.s32.totalorder %s17, 0
    %p44 = por %p42, %p43
    %s46 = sadd.s32 %s45, 1
    %p49 = scmp.eq.s32.totalorder %s11, 1
    %p50 = scmp.ne.s32.totalorder %s45, %s47
    %p51 = scmp.eq.s32.totalorder %s11, 0
    %p52 = por %p50, %p51
    %p53 = scmp.ne.s32.totalorder %s45, %s47
    %p54 = scmp.eq.s32.totalorder %s16, 1
    %p55 = por %p53, %p54
    %p56 = scmp.ne.s32.totalorder %s47, %s48
    %p57 = scmp.eq.s32.totalorder %s16, 0
    %p58 = por %p56, %p57
    %p59 = scmp.ne.s32.totalorder %s47, %s48
    %p60 = scmp.eq.s32.totalorder %s17, 1
    %p61 = por %p59, %p60
    %p63 = scmp.ne.s32.totalorder %s48, %s62
    %p64 = scmp.eq.s32.totalorder %s17, 0
    %p65 = por %p63, %p64
    %s67 = sadd.s32 %s66, 1
    %p70 = scmp.eq.s32.totalorder %s11, 1
    %p71 = scmp.ne.s32.totalorder %s66, %s68
    %p72 = scmp.eq.s32.totalorder %s11, 0
    %p73 = por %p71, %p72
    %p74 = scmp.ne.s32.totalorder %s66, %s68
    %p75 = scmp.eq.s32.totalorder %s16, 1
    %p76 = por %p74, %p75
    %p77 = scmp.ne.s32.totalorder %s68, %s69
    %p78 = scmp.eq.s32.totalorder %s16, 0
    %p79 = por %p77, %p78
    %p80 = scmp.ne.s32.totalorder %s68, %s69
    %p81 = scmp.eq.s32.totalorder %s17, 1
    %p82 = por %p80, %p81
    %p84 = scmp.ne.s32.totalorder %s69, %s83
    %p85 = scmp.eq.s32.totalorder %s17, 0
    %p86 = por %p84, %p85
    %s88 = sadd.s32 %s87, 1
    %p91 = scmp.eq.s32.totalorder %s11, 1
    %p92 = scmp.ne.s32.totalorder %s87, %s89
    %p93 = scmp.eq.s32.totalorder %s11, 0
    %p94 = por %p92, %p93
    %p95 = scmp.ne.s32.totalorder %s87, %s89
    %p96 = scmp.eq.s32.totalorder %s16, 1
    %p97 = por %p95, %p96
    %p98 = scmp.ne.s32.totalorder %s89, %s90
    %p99 = scmp.eq.s32.totalorder %s16, 0
    %p100 = por %p98, %p99
    %p101 = scmp.ne.s32.totalorder %s89, %s90
    %p102 = scmp.eq.s32.totalorder %s17, 1
    %p103 = por %p101, %p102
    %p105 = scmp.ne.s32.totalorder %s90, %s104
    %p106 = scmp.eq.s32.totalorder %s17, 0
    %p107 = por %p105, %p106
    %s109 = sadd.s32 %s108, 1
    %p112 = scmp.eq.s32.totalorder %s11, 1
    %p113 = scmp.ne.s32.totalorder %s108, %s110
    %p114 = scmp.eq.s32.totalorder %s11, 0
    %p115 = por %p113, %p114
    %p116 = scmp.ne.s32.totalorder %s108, %s110
    %p117 = scmp.eq.s32.totalorder %s16, 1
    %p118 = por %p116, %p117
    %p119 = scmp.ne.s32.totalorder %s110, %s111
    %p120 = scmp.eq.s32.totalorder %s16, 0
    %p121 = por %p119, %p120
    %p122 = scmp.ne.s32.totalorder %s110, %s111
    %p123 = scmp.eq.s32.totalorder %s17, 1
    %p124 = por %p122, %p123
    %p126 = scmp.ne.s32.totalorder %s111, %s125
    %p127 = scmp.eq.s32.totalorder %s17, 0
    %p128 = por %p126, %p127
    %s129 = ssub.s32 %s11, %s18
    %p130 = scmp.eq.s32.totalorder %s129, 0
    %s132 = sadd.s32 %s131, 1
    %s133 = scalar_select %p130, %s131, %s132
    %p136 = pneg %p130
    %p137 = scmp.eq.s32.totalorder %s11, 1
    %p138 = por %p136, %p137
    %p139 = scmp.ne.s32.totalorder %s131, %s134
    %p140 = scmp.eq.s32.totalorder %s11, 0
    %p141 = por %p139, %p140
    %p142 = scmp.ne.s32.totalorder %s131, %s134
    %p143 = scmp.eq.s32.totalorder %s16, 1
    %p144 = por %p142, %p143
    %p145 = scmp.ne.s32.totalorder %s134, %s135
    %p146 = scmp.eq.s32.totalorder %s16, 0
    %p147 = por %p145, %p146
    %p148 = scmp.ne.s32.totalorder %s134, %s135
    %p149 = scmp.eq.s32.totalorder %s17, 1
    %p150 = por %p148, %p149
    %p152 = scmp.ne.s32.totalorder %s135, %s151
    %p153 = scmp.eq.s32.totalorder %s17, 0
    %p154 = por %p152, %p153
    %p155 = scmp.le.s32.totalorder 1, %s11
    %p156 = scmp.lt.s32.totalorder %s11, 3
    %p157 = pnand %p155, %p156
    %p158 = pneg %p157
    // Predicated region
    $region9: #{patch_merging_forward.1} parent=5 // pred_check
      _
    $region10: #{patch_merging_forward.1} parent=5 // pred_check_branch
      %160 = sbr.rel (%p157) target = $region12
    $region11: #{patch_merging_forward.1} parent=5 // pred_region
      %s161 = ssub.s32 %s11, 1
      // Predicated region
      $region13: #{patch_merging_forward.1} parent=11 // pred_check
        %p162 = pneg %p58
      $region14: #{patch_merging_forward.1} parent=11 // pred_check_branch
        %164 = sbr.rel (%p162) target = $region16
      $region15: #{patch_merging_forward.1} parent=11 // pred_region
        _
      $region16: #{patch_merging_forward.1} parent=11 // pred_fallthru
        _
      // Predicated region
      $region17: #{patch_merging_forward.1} parent=11 // pred_check
        %p165 = pneg %p79
      $region18: #{patch_merging_forward.1} parent=11 // pred_check_branch
        %167 = sbr.rel (%p165) target = $region20
      $region19: #{patch_merging_forward.1} parent=11 // pred_region
        _
      $region20: #{patch_merging_forward.1} parent=11 // pred_fallthru
        _
      // Predicated region
      $region21: #{patch_merging_forward.1} parent=11 // pred_check
        %p168 = pneg %p100
      $region22: #{patch_merging_forward.1} parent=11 // pred_check_branch
        %170 = sbr.rel (%p168) target = $region24
      $region23: #{patch_merging_forward.1} parent=11 // pred_region
        _
      $region24: #{patch_merging_forward.1} parent=11 // pred_fallthru
        _
      // Predicated region
      $region25: #{patch_merging_forward.1} parent=11 // pred_check
        %p171 = pneg %p121
      $region26: #{patch_merging_forward.1} parent=11 // pred_check_branch
        %173 = sbr.rel (%p171) target = $region28
      $region27: #{patch_merging_forward.1} parent=11 // pred_region
        _
      $region28: #{patch_merging_forward.1} parent=11 // pred_fallthru
        _
    $region12: #{patch_merging_forward.1} parent=5 // pred_fallthru
      _
    %p174 = scmp.lt.s32.totalorder %s11, 2
    // Predicated region
    $region29: #{patch_merging_forward.1} parent=5 // pred_check
      %p175 = pneg %p174
    $region30: #{patch_merging_forward.1} parent=5 // pred_check_branch
      %177 = sbr.rel (%p175) target = $region32
    $region31: #{patch_merging_forward.1} parent=5 // pred_region
      // Predicated region
      $region33: #{patch_merging_forward.1} parent=31 // pred_check
        %p178 = pneg %p31
      $region34: #{patch_merging_forward.1} parent=31 // pred_check_branch
        %180 = sbr.rel (%p178) target = $region36
      $region35: #{patch_merging_forward.1} parent=31 // pred_region
        %s181 = smul.u32 8, %s11
        %p182 = scmp.lt.s32.totalorder %s181, 15
        %s183 = scalar_select %p182, %s181, 15
        %s184 = smul.addr %s183, 2
        %s185 = smul.addr %s184, 8
        %s186 = scalar_lea.vmem %s0, %s185
        %s187 = smul.u32 8, %s11
      $region36: #{patch_merging_forward.1} parent=31 // pred_fallthru
        _
    $region32: #{patch_merging_forward.1} parent=5 // pred_fallthru
      _
    %p188 = scmp.le.s32.totalorder 1, %s11
    %p189 = scmp.lt.s32.totalorder %s11, 3
    %p190 = pnand %p188, %p189
    %p191 = pneg %p190
    // Predicated region
    $region37: #{patch_merging_forward.1} parent=5 // pred_check
      _
    $region38: #{patch_merging_forward.1} parent=5 // pred_check_branch
      %193 = sbr.rel (%p190) target = $region40
    $region39: #{patch_merging_forward.1} parent=5 // pred_region
      %s194 = ssub.s32 %s11, 1
      %s195 = smul.u32 8, %s16
      %p196 = scmp.lt.s32.totalorder %s195, 15
      %s197 = scalar_select %p196, %s195, 15
      %s198 = smul.addr %s197, 2
      %s199 = smul.addr %s198, 8
      %s200 = scalar_lea.vmem %s0, %s199
      %p201 = pneg %p37
      %p202 = pneg %p34
      %p203 = pneg %p58
      %p204 = pneg %p55
      %p205 = pneg %p79
      %p206 = pneg %p76
      %p207 = pneg %p100
      %p208 = pneg %p97
      %p209 = pneg %p121
      %p210 = pneg %p118
      %p211 = pneg %p147
      %p212 = pneg %p144
      %s213 = smul.u32 8, %s16
      %p214 = scmp.lt.s32.totalorder %s213, 15
      %s215 = scalar_select %p214, %s213, 15
      %s216 = smul.addr %s215, 8
      %s217 = scalar_lea.vmem %s5, %s216
      %s218 = smul.u32 8, %s16
      %p219 = scmp.lt.s32.totalorder %s218, 15
      %s220 = scalar_select %p219, %s218, 15
      %s221 = smul.addr %s220, 2
      %s222 = smul.addr %s221, 8
      %s223 = scalar_lea.vmem %s0, %s222
      %s224 = smul.u32 8, %s16
      %s225 = smul.u32 8, %s16
      %p226 = scmp.lt.s32.totalorder %s225, 15
      %s227 = scalar_select %p226, %s225, 15
      %s228 = smul.addr %s227, 8
      %s229 = scalar_lea.vmem %s5, %s228
      %s230 = smul.u32 8, %s16
      %v231 = vld [vmem:[%s1] sm:$0xff]
      %v232 = vld [vmem:[%s1 + $0x8] sm:$0xff]
      %v233 = vld [vmem:[%s1 + $0x10] sm:$0xff]
      %v234 = vld [vmem:[%s1 + $0x18] sm:$0xff]
      %v235 = vld [vmem:[%s2] sm:$0xff]
      %v236 = vld [vmem:[%s2 + $0x8] sm:$0xff]
      %v237 = vld [vmem:[%s2 + $0x10] sm:$0xff]
      %v238 = vld [vmem:[%s2 + $0x18] sm:$0xff]
      %v239 = vld [vmem:[%s3] sm:$0x1]
      %v240 = vld [vmem:[%s4] sm:$0x1]
      %v241 = vld [vmem:[%s223] sm:$0xff]
      %v242 = vld [vmem:[%s223 + $0x10] sm:$0xff]
      %v243 = vld [vmem:[%s223 + $0x20] sm:$0xff]
      %v244 = vld [vmem:[%s223 + $0x30] sm:$0xff]
      %v245 = vld [vmem:[%s223 + $0x40] sm:$0xff]
      %v246 = vld [vmem:[%s223 + $0x50] sm:$0xff]
      %v247 = vld [vmem:[%s223 + $0x60] sm:$0xff]
      %v248 = vld [vmem:[%s223 + $0x70] sm:$0xff]
      %s249 = scalar_lea.vmem %s223, 8
      %v250 = vld [vmem:[%s249] sm:$0xff]
      %v251 = vld [vmem:[%s249 + $0x10] sm:$0xff]
      %v252 = vld [vmem:[%s249 + $0x20] sm:$0xff]
      %v253 = vld [vmem:[%s249 + $0x30] sm:$0xff]
      %v254 = vld [vmem:[%s249 + $0x40] sm:$0xff]
      %v255 = vld [vmem:[%s249 + $0x50] sm:$0xff]
      %v256 = vld [vmem:[%s249 + $0x60] sm:$0xff]
      %v257 = vld [vmem:[%s249 + $0x70] sm:$0xff]
      %vm258 = vcmask 261120
      %v260 = vsel %vm258, %v250, 0
      %v263 = vsel %vm258, %v251, 0
      %v266 = vsel %vm258, %v252, 0
      %v269 = vsel %vm258, %v253, 0
      %v272 = vsel %vm258, %v254, 0
      %v275 = vsel %vm258, %v255, 0
      %v278 = vsel %vm258, %v256, 0
      %v281 = vsel %vm258, %v257, 0
      %283 = vmatprep.subr.mxu0 0.0
      %284 = vmatpush1.msra.mxu0 0.0
      %285 = vmatprep.subr.mxu0 0.0
      %286 = vmatpush1.msra.mxu0 0.0
      %287 = vmatprep.subr.mxu0 0.0
      %288 = vmatpush1.msra.mxu0 0.0
      %289 = vmatprep.subr.mxu0 0.0
      %290 = vmatpush1.msra.mxu0 0.0
      %291 = vmatprep.subr.mxu0 0.0
      %292 = vmatpush1.msra.mxu0 0.0
      %293 = vmatprep.subr.mxu0 0.0
      %294 = vmatpush1.msra.mxu0 0.0
      %295 = vmatprep.subr.mxu0 0.0
      %296 = vmatpush1.msra.mxu0 0.0
      %297 = vmatprep.subr.mxu0 0.0
      %298 = vmatpush1.msra.mxu0 0.0
      %299 = vmatprep.subr.mxu0 0.0
      %300 = vmatpush1.msra.mxu0 0.0
      %301 = vmatprep.subr.mxu0 0.0
      %302 = vmatpush1.msra.mxu0 0.0
      %303 = vmatprep.subr.mxu0 0.0
      %304 = vmatpush1.msra.mxu0 0.0
      %305 = vmatprep.subr.mxu0 0.0
      %306 = vmatpush1.msra.mxu0 0.0
      %307 = vmatprep.subr.mxu0 0.0
      %308 = vmatpush1.msra.mxu0 %v238
      %309 = vmatprep.subr.mxu0 0.0
      %310 = vmatpush1.msra.mxu0 %v237
      %311 = vmatprep.subr.mxu0 0.0
      %312 = vmatpush1.msra.mxu0 %v236
      %313 = vmatprep.subr.mxu0 0.0
      %314 = vmatpush1.msra.mxu0 %v235
      %315 = vmatprep.subr.mxu0 0.0
      %316 = vmatpush2.msra.mxu0 0.0
      %317 = vmatprep.subr.mxu0 0.0
      %318 = vmatpush2.msra.mxu0 0.0
      %319 = vmatprep.subr.mxu0 0.0
      %320 = vmatpush2.msra.mxu0 0.0
      %321 = vmatprep.subr.mxu0 0.0
      %322 = vmatpush2.msra.mxu0 0.0
      %323 = vmatprep.subr.mxu0 0.0
      %324 = vmatpush2.msra.mxu0 0.0
      %325 = vmatprep.subr.mxu0 0.0
      %326 = vmatpush2.msra.mxu0 0.0
      %327 = vmatprep.subr.mxu0 0.0
      %328 = vmatpush2.msra.mxu0 0.0
      %329 = vmatprep.subr.mxu0 0.0
      %330 = vmatpush2.msra.mxu0 0.0
      %331 = vmatprep.subr.mxu0 0.0
      %332 = vmatpush2.msra.mxu0 0.0
      %333 = vmatprep.subr.mxu0 0.0
      %334 = vmatpush2.msra.mxu0 0.0
      %335 = vmatprep.subr.mxu0 0.0
      %336 = vmatpush2.msra.mxu0 0.0
      %337 = vmatprep.subr.mxu0 0.0
      %338 = vmatpush2.msra.mxu0 0.0
      %339 = vmatprep.subr.mxu0 0.0
      %340 = vmatpush2.msra.mxu0 0.0
      %341 = vmatprep.subr.mxu0 0.0
      %342 = vmatpush2.msra.mxu0 0.0
      %343 = vmatprep.subr.mxu0 0.0
      %344 = vmatpush2.msra.mxu0 0.0
      %345 = vmatprep.subr.mxu0 0.0
      %346 = vmatpush2.msra.mxu0 0.0
      %347 = vmatprep.mubr.f32.mxu0 0.0
      %348 = vmatmul.mubr.f32.gmra.mxu0 %v260
      %v349 = vpop.f32.mrf.mxu0
      %v350 = vadd.f32 0.0, %v349
      %v351 = vpop.f32.mrf.mxu0
      %352 = vmatprep.mubr.f32.mxu0 0.0
      %353 = vmatmul.mubr.f32.gmra.mxu0 %v263
      %v354 = vpop.f32.mrf.mxu0
      %v355 = vadd.f32 0.0, %v354
      %v356 = vpop.f32.mrf.mxu0
      %357 = vmatprep.mubr.f32.mxu0 0.0
      %358 = vmatmul.mubr.f32.gmra.mxu0 %v266
      %v359 = vpop.f32.mrf.mxu0
      %v360 = vadd.f32 0.0, %v359
      %v361 = vpop.f32.mrf.mxu0
      %362 = vmatprep.mubr.f32.mxu0 0.0
      %363 = vmatmul.mubr.f32.gmra.mxu0 %v269
      %v364 = vpop.f32.mrf.mxu0
      %v365 = vadd.f32 0.0, %v364
      %v366 = vpop.f32.mrf.mxu0
      %367 = vmatprep.mubr.f32.mxu0 0.0
      %368 = vmatmul.mubr.f32.gmra.mxu0 %v272
      %v369 = vpop.f32.mrf.mxu0
      %v370 = vadd.f32 0.0, %v369
      %v371 = vpop.f32.mrf.mxu0
      %372 = vmatprep.mubr.f32.mxu0 0.0
      %373 = vmatmul.mubr.f32.gmra.mxu0 %v275
      %v374 = vpop.f32.mrf.mxu0
      %v375 = vadd.f32 0.0, %v374
      %v376 = vpop.f32.mrf.mxu0
      %377 = vmatprep.mubr.f32.mxu0 0.0
      %378 = vmatmul.mubr.f32.gmra.mxu0 %v278
      %v379 = vpop.f32.mrf.mxu0
      %v380 = vadd.f32 0.0, %v379
      %v381 = vpop.f32.mrf.mxu0
      %382 = vmatprep.mubr.f32.mxu0 0.0
      %383 = vmatmul.mubr.f32.gmra.mxu0 %v281
      %v384 = vpop.f32.mrf.mxu0
      %v385 = vadd.f32 0.0, %v384
      %v386 = vpop.f32.mrf.mxu0
      %387 = vdwg.mxu0
      %v389 = vsel %vm258, %v241, 0
      %v392 = vsel %vm258, %v242, 0
      %v395 = vsel %vm258, %v243, 0
      %v398 = vsel %vm258, %v244, 0
      %v401 = vsel %vm258, %v245, 0
      %v404 = vsel %vm258, %v246, 0
      %v407 = vsel %vm258, %v247, 0
      %v410 = vsel %vm258, %v248, 0
      %412 = vmatprep.subr.mxu0 0.0
      %413 = vmatpush1.msra.mxu0 0.0
      %414 = vmatprep.subr.mxu0 0.0
      %415 = vmatpush1.msra.mxu0 0.0
      %416 = vmatprep.subr.mxu0 0.0
      %417 = vmatpush1.msra.mxu0 0.0
      %418 = vmatprep.subr.mxu0 0.0
      %419 = vmatpush1.msra.mxu0 0.0
      %420 = vmatprep.subr.mxu0 0.0
      %421 = vmatpush1.msra.mxu0 0.0
      %422 = vmatprep.subr.mxu0 0.0
      %423 = vmatpush1.msra.mxu0 0.0
      %424 = vmatprep.subr.mxu0 0.0
      %425 = vmatpush1.msra.mxu0 0.0
      %426 = vmatprep.subr.mxu0 0.0
      %427 = vmatpush1.msra.mxu0 0.0
      %428 = vmatprep.subr.mxu0 0.0
      %429 = vmatpush1.msra.mxu0 0.0
      %430 = vmatprep.subr.mxu0 0.0
      %431 = vmatpush1.msra.mxu0 0.0
      %432 = vmatprep.subr.mxu0 0.0
      %433 = vmatpush1.msra.mxu0 0.0
      %434 = vmatprep.subr.mxu0 0.0
      %435 = vmatpush1.msra.mxu0 0.0
      %436 = vmatprep.subr.mxu0 0.0
      %437 = vmatpush1.msra.mxu0 %v234
      %438 = vmatprep.subr.mxu0 0.0
      %439 = vmatpush1.msra.mxu0 %v233
      %440 = vmatprep.subr.mxu0 0.0
      %441 = vmatpush1.msra.mxu0 %v232
      %442 = vmatprep.subr.mxu0 0.0
      %443 = vmatpush1.msra.mxu0 %v231
      %444 = vmatprep.subr.mxu0 0.0
      %445 = vmatpush2.msra.mxu0 0.0
      %446 = vmatprep.subr.mxu0 0.0
      %447 = vmatpush2.msra.mxu0 0.0
      %448 = vmatprep.subr.mxu0 0.0
      %449 = vmatpush2.msra.mxu0 0.0
      %450 = vmatprep.subr.mxu0 0.0
      %451 = vmatpush2.msra.mxu0 0.0
      %452 = vmatprep.subr.mxu0 0.0
      %453 = vmatpush2.msra.mxu0 0.0
      %454 = vmatprep.subr.mxu0 0.0
      %455 = vmatpush2.msra.mxu0 0.0
      %456 = vmatprep.subr.mxu0 0.0
      %457 = vmatpush2.msra.mxu0 0.0
      %458 = vmatprep.subr.mxu0 0.0
      %459 = vmatpush2.msra.mxu0 0.0
      %460 = vmatprep.subr.mxu0 0.0
      %461 = vmatpush2.msra.mxu0 0.0
      %462 = vmatprep.subr.mxu0 0.0
      %463 = vmatpush2.msra.mxu0 0.0
      %464 = vmatprep.subr.mxu0 0.0
      %465 = vmatpush2.msra.mxu0 0.0
      %466 = vmatprep.subr.mxu0 0.0
      %467 = vmatpush2.msra.mxu0 0.0
      %468 = vmatprep.subr.mxu0 0.0
      %469 = vmatpush2.msra.mxu0 0.0
      %470 = vmatprep.subr.mxu0 0.0
      %471 = vmatpush2.msra.mxu0 0.0
      %472 = vmatprep.subr.mxu0 0.0
      %473 = vmatpush2.msra.mxu0 0.0
      %474 = vmatprep.subr.mxu0 0.0
      %475 = vmatpush2.msra.mxu0 0.0
      %476 = vmatprep.mubr.f32.mxu0 0.0
      %477 = vmatmul.mubr.f32.gmra.mxu0 %v389
      %v478 = vpop.f32.mrf.mxu0
      %v479 = vadd.f32 %v350, %v478
      %v480 = vpop.f32.mrf.mxu0
      %481 = vmatprep.mubr.f32.mxu0 0.0
      %482 = vmatmul.mubr.f32.gmra.mxu0 %v392
      %v483 = vpop.f32.mrf.mxu0
      %v484 = vadd.f32 %v355, %v483
      %v485 = vpop.f32.mrf.mxu0
      %486 = vmatprep.mubr.f32.mxu0 0.0
      %487 = vmatmul.mubr.f32.gmra.mxu0 %v395
      %v488 = vpop.f32.mrf.mxu0
      %v489 = vadd.f32 %v360, %v488
      %v490 = vpop.f32.mrf.mxu0
      %491 = vmatprep.mubr.f32.mxu0 0.0
      %492 = vmatmul.mubr.f32.gmra.mxu0 %v398
      %v493 = vpop.f32.mrf.mxu0
      %v494 = vadd.f32 %v365, %v493
      %v495 = vpop.f32.mrf.mxu0
      %496 = vmatprep.mubr.f32.mxu0 0.0
      %497 = vmatmul.mubr.f32.gmra.mxu0 %v401
      %v498 = vpop.f32.mrf.mxu0
      %v499 = vadd.f32 %v370, %v498
      %v500 = vpop.f32.mrf.mxu0
      %501 = vmatprep.mubr.f32.mxu0 0.0
      %502 = vmatmul.mubr.f32.gmra.mxu0 %v404
      %v503 = vpop.f32.mrf.mxu0
      %v504 = vadd.f32 %v375, %v503
      %v505 = vpop.f32.mrf.mxu0
      %506 = vmatprep.mubr.f32.mxu0 0.0
      %507 = vmatmul.mubr.f32.gmra.mxu0 %v407
      %v508 = vpop.f32.mrf.mxu0
      %v509 = vadd.f32 %v380, %v508
      %v510 = vpop.f32.mrf.mxu0
      %511 = vmatprep.mubr.f32.mxu0 0.0
      %512 = vmatmul.mubr.f32.gmra.mxu0 %v410
      %v513 = vpop.f32.mrf.mxu0
      %v514 = vadd.f32 %v385, %v513
      %v515 = vpop.f32.mrf.mxu0
      %516 = vdwg.mxu0
      %v517 = vsel %vm258, %v241, 0.0
      %518 = vadd.xlane.f32.xlu0 %v517
      %v519 = vpop.xlane.xlu0 %518
      %v520 = vsel %vm258, %v242, 0.0
      %521 = vadd.xlane.f32.xlu0 %v520
      %v522 = vpop.xlane.xlu0 %521
      %v523 = vsel %vm258, %v243, 0.0
      %524 = vadd.xlane.f32.xlu0 %v523
      %v525 = vpop.xlane.xlu0 %524
      %v526 = vsel %vm258, %v244, 0.0
      %527 = vadd.xlane.f32.xlu0 %v526
      %v528 = vpop.xlane.xlu0 %527
      %v529 = vsel %vm258, %v245, 0.0
      %530 = vadd.xlane.f32.xlu0 %v529
      %v531 = vpop.xlane.xlu0 %530
      %v532 = vsel %vm258, %v246, 0.0
      %533 = vadd.xlane.f32.xlu0 %v532
      %v534 = vpop.xlane.xlu0 %533
      %v535 = vsel %vm258, %v247, 0.0
      %536 = vadd.xlane.f32.xlu0 %v535
      %v537 = vpop.xlane.xlu0 %536
      %v538 = vsel %vm258, %v248, 0.0
      %539 = vadd.xlane.f32.xlu0 %v538
      %v540 = vpop.xlane.xlu0 %539
      %v541 = vsel %vm258, %v250, 0.0
      %542 = vadd.xlane.f32.xlu0 %v541
      %v543 = vpop.xlane.xlu0 %542
      %v544 = vsel %vm258, %v251, 0.0
      %545 = vadd.xlane.f32.xlu0 %v544
      %v546 = vpop.xlane.xlu0 %545
      %v547 = vsel %vm258, %v252, 0.0
      %548 = vadd.xlane.f32.xlu0 %v547
      %v549 = vpop.xlane.xlu0 %548
      %v550 = vsel %vm258, %v253, 0.0
      %551 = vadd.xlane.f32.xlu0 %v550
      %v552 = vpop.xlane.xlu0 %551
      %v553 = vsel %vm258, %v254, 0.0
      %554 = vadd.xlane.f32.xlu0 %v553
      %v555 = vpop.xlane.xlu0 %554
      %v556 = vsel %vm258, %v255, 0.0
      %557 = vadd.xlane.f32.xlu0 %v556
      %v558 = vpop.xlane.xlu0 %557
      %v559 = vsel %vm258, %v256, 0.0
      %560 = vadd.xlane.f32.xlu0 %v559
      %v561 = vpop.xlane.xlu0 %560
      %v562 = vsel %vm258, %v257, 0.0
      %563 = vadd.xlane.f32.xlu0 %v562
      %v564 = vpop.xlane.xlu0 %563
      %v565 = vadd.f32 %v519, %v543
      %v566 = vadd.f32 %v522, %v546
      %v567 = vadd.f32 %v525, %v549
      %v568 = vadd.f32 %v528, %v552
      %v569 = vadd.f32 %v531, %v555
      %v570 = vadd.f32 %v534, %v558
      %v571 = vadd.f32 %v537, %v561
      %v572 = vadd.f32 %v540, %v564
      %v573 = vmul.f32 %v565, 0.015625
      %v574 = vmul.f32 %v566, 0.015625
      %v575 = vmul.f32 %v567, 0.015625
      %v576 = vmul.f32 %v568, 0.015625
      %v577 = vmul.f32 %v569, 0.015625
      %v578 = vmul.f32 %v570, 0.015625
      %v579 = vmul.f32 %v571, 0.015625
      %v580 = vmul.f32 %v572, 0.015625
      %v581 = vsub.f32 %v241, %v573
      %v582 = vsub.f32 %v242, %v574
      %v583 = vsub.f32 %v243, %v575
      %v584 = vsub.f32 %v244, %v576
      %v585 = vsub.f32 %v245, %v577
      %v586 = vsub.f32 %v246, %v578
      %v587 = vsub.f32 %v247, %v579
      %v588 = vsub.f32 %v248, %v580
      %v589 = vmul.f32 %v581, %v581
      %v590 = vmul.f32 %v582, %v582
      %v591 = vmul.f32 %v583, %v583
      %v592 = vmul.f32 %v584, %v584
      %v593 = vmul.f32 %v585, %v585
      %v594 = vmul.f32 %v586, %v586
      %v595 = vmul.f32 %v587, %v587
      %v596 = vmul.f32 %v588, %v588
      %v597 = vsel %vm258, %v589, 0.0
      %598 = vadd.xlane.f32.xlu0 %v597
      %v599 = vpop.xlane.xlu0 %598
      %v600 = vsel %vm258, %v590, 0.0
      %601 = vadd.xlane.f32.xlu0 %v600
      %v602 = vpop.xlane.xlu0 %601
      %v603 = vsel %vm258, %v591, 0.0
      %604 = vadd.xlane.f32.xlu0 %v603
      %v605 = vpop.xlane.xlu0 %604
      %v606 = vsel %vm258, %v592, 0.0
      %607 = vadd.xlane.f32.xlu0 %v606
      %v608 = vpop.xlane.xlu0 %607
      %v609 = vsel %vm258, %v593, 0.0
      %610 = vadd.xlane.f32.xlu0 %v609
      %v611 = vpop.xlane.xlu0 %610
      %v612 = vsel %vm258, %v594, 0.0
      %613 = vadd.xlane.f32.xlu0 %v612
      %v614 = vpop.xlane.xlu0 %613
      %v615 = vsel %vm258, %v595, 0.0
      %616 = vadd.xlane.f32.xlu0 %v615
      %v617 = vpop.xlane.xlu0 %616
      %v618 = vsel %vm258, %v596, 0.0
      %619 = vadd.xlane.f32.xlu0 %v618
      %v620 = vpop.xlane.xlu0 %619
      %v621 = vsub.f32 %v250, %v573
      %v622 = vsub.f32 %v251, %v574
      %v623 = vsub.f32 %v252, %v575
      %v624 = vsub.f32 %v253, %v576
      %v625 = vsub.f32 %v254, %v577
      %v626 = vsub.f32 %v255, %v578
      %v627 = vsub.f32 %v256, %v579
      %v628 = vsub.f32 %v257, %v580
      %v629 = vmul.f32 %v621, %v621
      %v630 = vmul.f32 %v622, %v622
      %v631 = vmul.f32 %v623, %v623
      %v632 = vmul.f32 %v624, %v624
      %v633 = vmul.f32 %v625, %v625
      %v634 = vmul.f32 %v626, %v626
      %v635 = vmul.f32 %v627, %v627
      %v636 = vmul.f32 %v628, %v628
      %v637 = vsel %vm258, %v629, 0.0
      %638 = vadd.xlane.f32.xlu0 %v637
      %v639 = vpop.xlane.xlu0 %638
      %v640 = vsel %vm258, %v630, 0.0
      %641 = vadd.xlane.f32.xlu0 %v640
      %v642 = vpop.xlane.xlu0 %641
      %v643 = vsel %vm258, %v631, 0.0
      %644 = vadd.xlane.f32.xlu0 %v643
      %v645 = vpop.xlane.xlu0 %644
      %v646 = vsel %vm258, %v632, 0.0
      %647 = vadd.xlane.f32.xlu0 %v646
      %v648 = vpop.xlane.xlu0 %647
      %v649 = vsel %vm258, %v633, 0.0
      %650 = vadd.xlane.f32.xlu0 %v649
      %v651 = vpop.xlane.xlu0 %650
      %v652 = vsel %vm258, %v634, 0.0
      %653 = vadd.xlane.f32.xlu0 %v652
      %v654 = vpop.xlane.xlu0 %653
      %v655 = vsel %vm258, %v635, 0.0
      %656 = vadd.xlane.f32.xlu0 %v655
      %v657 = vpop.xlane.xlu0 %656
      %v658 = vsel %vm258, %v636, 0.0
      %659 = vadd.xlane.f32.xlu0 %v658
      %v660 = vpop.xlane.xlu0 %659
      %v661 = vadd.f32 %v599, %v639
      %v662 = vadd.f32 %v602, %v642
      %v663 = vadd.f32 %v605, %v645
      %v664 = vadd.f32 %v608, %v648
      %v665 = vadd.f32 %v611, %v651
      %v666 = vadd.f32 %v614, %v654
      %v667 = vadd.f32 %v617, %v657
      %v668 = vadd.f32 %v620, %v660
      %v669 = vmul.f32 %v661, 0.015625
      %v670 = vmul.f32 %v662, 0.015625
      %v671 = vmul.f32 %v663, 0.015625
      %v672 = vmul.f32 %v664, 0.015625
      %v673 = vmul.f32 %v665, 0.015625
      %v674 = vmul.f32 %v666, 0.015625
      %v675 = vmul.f32 %v667, 0.015625
      %v676 = vmul.f32 %v668, 0.015625
      %v677 = vadd.f32 %v669, 1e-05
      %v678 = vadd.f32 %v670, 1e-05
      %v679 = vadd.f32 %v671, 1e-05
      %v680 = vadd.f32 %v672, 1e-05
      %v681 = vadd.f32 %v673, 1e-05
      %v682 = vadd.f32 %v674, 1e-05
      %v683 = vadd.f32 %v675, 1e-05
      %v684 = vadd.f32 %v676, 1e-05
      %v685 = vrsqrt.pop %v677
      %v686 = vrsqrt.pop %v678
      %v687 = vrsqrt.pop %v679
      %v688 = vrsqrt.pop %v680
      %v689 = vrsqrt.pop %v681
      %v690 = vrsqrt.pop %v682
      %v691 = vrsqrt.pop %v683
      %v692 = vrsqrt.pop %v684
      %v694 = vlaneseq
      %v695 = vshrl.u32 %v694, 7
      %v696 = vsub.s32 0, %v695
      %v697 = vrot.slane %v239, %v696
      %v699 = vmul.f32 %v573, %v697
      %v700 = vmul.f32 %v574, %v697
      %v701 = vmul.f32 %v575, %v697
      %v702 = vmul.f32 %v576, %v697
      %v703 = vmul.f32 %v577, %v697
      %v704 = vmul.f32 %v578, %v697
      %v705 = vmul.f32 %v579, %v697
      %v706 = vmul.f32 %v580, %v697
      %v707 = vsub.f32 %v479, %v699
      %v708 = vsub.f32 %v484, %v700
      %v709 = vsub.f32 %v489, %v701
      %v710 = vsub.f32 %v494, %v702
      %v711 = vsub.f32 %v499, %v703
      %v712 = vsub.f32 %v504, %v704
      %v713 = vsub.f32 %v509, %v705
      %v714 = vsub.f32 %v514, %v706
      %v715 = vmul.f32 %v707, %v685
      %v716 = vmul.f32 %v708, %v686
      %v717 = vmul.f32 %v709, %v687
      %v718 = vmul.f32 %v710, %v688
      %v719 = vmul.f32 %v711, %v689
      %v720 = vmul.f32 %v712, %v690
      %v721 = vmul.f32 %v713, %v691
      %v722 = vmul.f32 %v714, %v692
      %v724 = vlaneseq
      %v725 = vshrl.u32 %v724, 7
      %v726 = vsub.s32 0, %v725
      %v727 = vrot.slane %v240, %v726
      %v729 = vadd.f32 %v715, %v727
      %v730 = vadd.f32 %v716, %v727
      %v731 = vadd.f32 %v717, %v727
      %v732 = vadd.f32 %v718, %v727
      %v733 = vadd.f32 %v719, %v727
      %v734 = vadd.f32 %v720, %v727
      %v735 = vadd.f32 %v721, %v727
      %v736 = vadd.f32 %v722, %v727
      %737 = vst.msk [vmem:[%s229] sm:$0xff] %vm258, %v729
      %738 = vst.msk [vmem:[%s229 + $0x8] sm:$0xff] %vm258, %v730
      %739 = vst.msk [vmem:[%s229 + $0x10] sm:$0xff] %vm258, %v731
      %740 = vst.msk [vmem:[%s229 + $0x18] sm:$0xff] %vm258, %v732
      %741 = vst.msk [vmem:[%s229 + $0x20] sm:$0xff] %vm258, %v733
      %742 = vst.msk [vmem:[%s229 + $0x28] sm:$0xff] %vm258, %v734
      %743 = vst.msk [vmem:[%s229 + $0x30] sm:$0xff] %vm258, %v735
      %744 = vst.msk [vmem:[%s229 + $0x38] sm:$0xff] %vm258, %v736
      %s745 = smul.u32 8, %s16
      %p746 = scmp.lt.s32.totalorder %s745, 15
      %s747 = scalar_select %p746, %s745, 15
      %s748 = smul.addr %s747, 8
      %s749 = scalar_lea.vmem %s5, %s748
      // Predicated region
      $region41: #{patch_merging_forward.1} parent=39 // pred_check
        %p750 = pneg %p144
      $region42: #{patch_merging_forward.1} parent=39 // pred_check_branch
        %752 = sbr.rel (%p750) target = $region44
      $region43: #{patch_merging_forward.1} parent=39 // pred_region
        %s753 = smul.u32 8, %s16
      $region44: #{patch_merging_forward.1} parent=39 // pred_fallthru
        _
    $region40: #{patch_merging_forward.1} parent=5 // pred_fallthru
      _
    %p754 = scmp.le.s32.totalorder 2, %s11
    // Predicated region
    $region45: #{patch_merging_forward.1} parent=5 // pred_check
      %p755 = pneg %p754
    $region46: #{patch_merging_forward.1} parent=5 // pred_check_branch
      %757 = sbr.rel (%p755) target = $region48
    $region47: #{patch_merging_forward.1} parent=5 // pred_region
      %s758 = ssub.s32 %s11, 2
      // Predicated region
      $region49: #{patch_merging_forward.1} parent=47 // pred_check
        %p759 = pneg %p150
      $region50: #{patch_merging_forward.1} parent=47 // pred_check_branch
        %761 = sbr.rel (%p759) target = $region52
      $region51: #{patch_merging_forward.1} parent=47 // pred_region
        %s762 = smul.u32 8, %s17
        %p763 = scmp.lt.s32.totalorder %s762, 15
        %s764 = scalar_select %p763, %s762, 15
        %s765 = smul.addr %s764, 8
        %s766 = scalar_lea.vmem %s5, %s765
      $region52: #{patch_merging_forward.1} parent=47 // pred_fallthru
        _
    $region48: #{patch_merging_forward.1} parent=5 // pred_fallthru
      _
  $region6: #{patch_merging_forward.1} parent=0 // loop_footer
    %s15 = sadd.s32 1, %s11
  $region7: #{patch_merging_forward.1} parent=0 // loop_footer_branch
    %10 = sbr.rel target = $region3
  $region8: #{patch_merging_forward.1} parent=0 // loop_exit
    _

</llo_original>
